<compile_context>
chip_gen: v6e
topology: v6e:2x2x1
jax: 0.10.0
libtpu: 0.0.40
codegen_flags: <defaults>
</compile_context>

<pallas_src>
import functools
import math

import jax
import jax.numpy as jnp
from jax import lax
from jax.experimental import pallas as pl
from jax.experimental.pallas import tpu as pltpu


# ------------------------------ tiling helpers ------------------------------ #
def _round_up(x, m):
    return ((x + m - 1) // m) * m


def _tile_for(dim, target):
    """Return (tile, padded_dim).

    If the dim fits in one target-sized tile, use the whole dim (allowed by the
    '(8,128) or full dim' rule, no padding).  Otherwise use the aligned target
    tile and pad the dim up to a multiple of it — never fall back to one giant
    block (VMEM hazard, esp. on v7x's 64 MiB).
    """
    if dim <= target:
        return dim, dim
    return target, _round_up(dim, target)


# ----------------------------- linear kernels ------------------------------ #
def _linear_kernel(x_ref, w_ref, b_ref, o_ref, acc_ref):
    k = pl.program_id(2)

    @pl.when(k == 0)
    def _():
        acc_ref[...] = jnp.zeros_like(acc_ref)

    acc_ref[...] += jnp.dot(x_ref[...], w_ref[...],
                            preferred_element_type=jnp.float32)

    @pl.when(k == pl.num_programs(2) - 1)
    def _():
        o_ref[...] = (acc_ref[...] + b_ref[...]).astype(o_ref.dtype)


def linear(x, w, b, *, out_dtype=None, tm=512, tn=256, tk=512):
    """y = x @ w + b.  x:[M,K] (compute dtype), w:[K,N] (compute dtype), b:[N] f32."""
    M, K = x.shape
    N = w.shape[1]
    out_dtype = out_dtype or x.dtype
    tm, Mp = _tile_for(M, tm)
    tn, Np = _tile_for(N, tn)
    tk, Kp = _tile_for(K, tk)
    if (Mp, Kp) != (M, K):
        x = jnp.pad(x, ((0, Mp - M), (0, Kp - K)))
    if (Kp, Np) != (K, N):
        w = jnp.pad(w, ((0, Kp - K), (0, Np - N)))
    b2 = b.reshape(1, N)
    if Np != N:
        b2 = jnp.pad(b2, ((0, 0), (0, Np - N)))

    out = pl.pallas_call(
        _linear_kernel,
        out_shape=jax.ShapeDtypeStruct((Mp, Np), out_dtype),
        grid=(Mp // tm, Np // tn, Kp // tk),
        in_specs=[
            pl.BlockSpec((tm, tk), lambda i, j, k: (i, k)),
            pl.BlockSpec((tk, tn), lambda i, j, k: (k, j)),
            pl.BlockSpec((1, tn), lambda i, j, k: (0, j)),
        ],
        out_specs=pl.BlockSpec((tm, tn), lambda i, j, k: (i, j)),
        scratch_shapes=[pltpu.VMEM((tm, tn), jnp.float32)],
        compiler_params=pltpu.CompilerParams(
            dimension_semantics=("parallel", "parallel", "arbitrary")),
    )(x, w, b2)
    if (Mp, Np) != (M, N):
        out = out[:M, :N]
    return out


def _linear2_kernel(x_ref, wa_ref, wb_ref, ba_ref, bb_ref,
                    oa_ref, ob_ref, acca_ref, accb_ref):
    k = pl.program_id(2)

    @pl.when(k == 0)
    def _():
        acca_ref[...] = jnp.zeros_like(acca_ref)
        accb_ref[...] = jnp.zeros_like(accb_ref)

    x = x_ref[...]
    acca_ref[...] += jnp.dot(x, wa_ref[...], preferred_element_type=jnp.float32)
    accb_ref[...] += jnp.dot(x, wb_ref[...], preferred_element_type=jnp.float32)

    @pl.when(k == pl.num_programs(2) - 1)
    def _():
        oa_ref[...] = (acca_ref[...] + ba_ref[...]).astype(oa_ref.dtype)
        ob_ref[...] = (accb_ref[...] + bb_ref[...]).astype(ob_ref.dtype)


def linear2(x, wa, wb, ba, bb, *, out_dtype=None, tm=512, tn=256, tk=512):
    """Two projections of the same input (K and V): one x read, two lane-dense outs."""
    M, K = x.shape
    N = wa.shape[1]
    out_dtype = out_dtype or x.dtype
    tm, Mp = _tile_for(M, tm)
    tn, Np = _tile_for(N, tn)
    tk, Kp = _tile_for(K, tk)
    if (Mp, Kp) != (M, K):
        x = jnp.pad(x, ((0, Mp - M), (0, Kp - K)))
    if (Kp, Np) != (K, N):
        wa = jnp.pad(wa, ((0, Kp - K), (0, Np - N)))
        wb = jnp.pad(wb, ((0, Kp - K), (0, Np - N)))
    ba2 = ba.reshape(1, N)
    bb2 = bb.reshape(1, N)
    if Np != N:
        ba2 = jnp.pad(ba2, ((0, 0), (0, Np - N)))
        bb2 = jnp.pad(bb2, ((0, 0), (0, Np - N)))

    oa, ob = pl.pallas_call(
        _linear2_kernel,
        out_shape=(jax.ShapeDtypeStruct((Mp, Np), out_dtype),
                   jax.ShapeDtypeStruct((Mp, Np), out_dtype)),
        grid=(Mp // tm, Np // tn, Kp // tk),
        in_specs=[
            pl.BlockSpec((tm, tk), lambda i, j, k: (i, k)),
            pl.BlockSpec((tk, tn), lambda i, j, k: (k, j)),
            pl.BlockSpec((tk, tn), lambda i, j, k: (k, j)),
            pl.BlockSpec((1, tn), lambda i, j, k: (0, j)),
            pl.BlockSpec((1, tn), lambda i, j, k: (0, j)),
        ],
        out_specs=(pl.BlockSpec((tm, tn), lambda i, j, k: (i, j)),
                   pl.BlockSpec((tm, tn), lambda i, j, k: (i, j))),
        scratch_shapes=[pltpu.VMEM((tm, tn), jnp.float32),
                        pltpu.VMEM((tm, tn), jnp.float32)],
        compiler_params=pltpu.CompilerParams(
            dimension_semantics=("parallel", "parallel", "arbitrary")),
    )(x, wa, wb, ba2, bb2)
    if (Mp, Np) != (M, N):
        oa, ob = oa[:M, :N], ob[:M, :N]
    return oa, ob


# --------------------- attention + out_proj (fused) kernel ------------------ #
def _attn_outproj_kernel(q_ref, k_ref, v_ref, m_ref, wo_ref, bo_ref, o_ref, *, heads):
    # q_ref [1,tq,E] (scale already folded into wq), k/v_ref [1,Nk,E],
    # m_ref [1,1,Nk] f32 additive, wo_ref [E,E], bo_ref [1,E] f32, o_ref [1,tq,E].
    E = q_ref.shape[-1]
    D = E // heads

    q_all = q_ref[0]                  # single lane-dense load per operand
    k_all = k_ref[0]
    v_all = v_ref[0]
    mask = m_ref[0]                   # [1, Nk] broadcast over queries

    # TODO(synk): if D % 128 == 0, move heads onto a grid axis instead of this
    #             static unroll; with D < 128 (typical) the per-head lane slices
    #             below are vreg-level shuffles, but loads/stores stay full-width.
    outs = []
    for h in range(heads):            # static unroll; static lane slices
        lo = h * D
        q = q_all[:, lo:lo + D]       # [tq, D]
        k = k_all[:, lo:lo + D]       # [Nk, D]
        v = v_all[:, lo:lo + D]       # [Nk, D]
        # qd,kd->qk contracting last dims (no k.T / XLU transpose), f32 accum.
        s = lax.dot_general(q, k, (((1,), (1,)), ((), ())),
                            preferred_element_type=jnp.float32)   # [tq, Nk]
        s = s + mask
        # softmax kept in f32 (v5e has no bf16 VPU/EUP).
        mx = jnp.max(s, axis=-1, keepdims=True)
        p = jnp.exp(s - mx)
        denom = jnp.sum(p, axis=-1, keepdims=True)
        p = p * pl.reciprocal(denom, approx=True)                 # EUP slot
        outs.append(jnp.dot(p.astype(v.dtype), v,
                            preferred_element_type=jnp.float32))  # [tq, D] f32

    attn = jnp.concatenate(outs, axis=-1)                         # [tq, E] f32
    # fused out_proj: wo is VMEM-resident (constant block index across grid).
    out = jnp.dot(attn.astype(wo_ref.dtype), wo_ref[...],
                  preferred_element_type=jnp.float32) + bo_ref[...]
    o_ref[0] = out.astype(o_ref.dtype)                            # ONE lane-dense store


def attention_outproj(q, k, v, mask, wo, bo, heads, *, out_dtype, tq=256):
    """q:[B,Nq,E], k,v:[B,Nk,E] (head-in-lanes), mask:[B,1,Nk] additive f32.

    Returns out_proj(softmax(q k^T + mask) v) -> [B, Nq, E].
    """
    B, Nq, E = q.shape
    Nk = k.shape[1]
    tq, Nqp = _tile_for(Nq, tq)
    if Nqp != Nq:
        q = jnp.pad(q, ((0, 0), (0, Nqp - Nq), (0, 0)))
    bo2 = bo.reshape(1, E)

    # TODO(synk): for very long Nk on v7x (64 MiB VMEM) add Nk tiling with an
    #             online-softmax accumulator; here K/V stay resident per batch.
    out = pl.pallas_call(
        functools.partial(_attn_outproj_kernel, heads=heads),
        out_shape=jax.ShapeDtypeStruct((B, Nqp, E), out_dtype),
        grid=(B, Nqp // tq),
        in_specs=[
            pl.BlockSpec((1, tq, E), lambda b, i: (b, i, 0)),
            pl.BlockSpec((1, Nk, E), lambda b, i: (b, 0, 0)),   # resident across i
            pl.BlockSpec((1, Nk, E), lambda b, i: (b, 0, 0)),   # resident across i
            pl.BlockSpec((1, 1, Nk), lambda b, i: (b, 0, 0)),   # resident across i
            pl.BlockSpec((E, E), lambda b, i: (0, 0)),          # wo resident
            pl.BlockSpec((1, E), lambda b, i: (0, 0)),          # bo resident
        ],
        out_specs=pl.BlockSpec((1, tq, E), lambda b, i: (b, i, 0)),
        compiler_params=pltpu.CompilerParams(
            dimension_semantics=("parallel", "parallel")),
    )(q, k, v, mask, wo, bo2)
    if Nqp != Nq:
        out = out[:, :Nq, :]
    return out


# ------------------------------ full forward ------------------------------- #
# Large finite negative instead of -inf (robust if a row is ever fully masked
# and safe for bf16 paths); identical results when any key is unmasked.
_MASK_VALUE = float(jnp.finfo(jnp.float32).min) / 2.0


def prepare_params(params, heads, compute_dtype=jnp.float32):
    """One-time parameter prep: split wkv, fold 1/sqrt(D) into wq/bq, cast weights."""
    E = params["wq"].shape[0]
    D = E // heads
    scale = 1.0 / math.sqrt(D)
    wk, wv = params["wkv"][:, :E], params["wkv"][:, E:]
    bk, bv = params["bkv"][:E], params["bkv"][E:]
    return {
        "wq": (params["wq"] * scale).astype(compute_dtype),
        "bq": (params["bq"] * scale).astype(jnp.float32),
        "wk": wk.astype(compute_dtype), "bk": bk.astype(jnp.float32),
        "wv": wv.astype(compute_dtype), "bv": bv.astype(jnp.float32),
        "wo": params["wo"].astype(compute_dtype),
        "bo": params["bo"].astype(jnp.float32),
        "compute_dtype": compute_dtype,
    }


def cross_attention(query, kv, prep, heads, pad_mask=None):
    """Matches CrossAttention.forward (eval mode, dropout=0, no attn_mask/is_causal)."""
    B, Nq, E = query.shape
    _, Nk, _ = kv.shape
    cdt = prep["compute_dtype"]
    out_dtype = query.dtype

    # q projection (scale folded into wq/bq)
    xq = query.reshape(B * Nq, E).astype(cdt)
    q = linear(xq, prep["wq"], prep["bq"], out_dtype=cdt).reshape(B, Nq, E)

    # kv projection: one x read, K and V emitted as separate lane-dense arrays.
    xkv = kv.reshape(B * Nk, E).astype(cdt)
    k, v = linear2(xkv, prep["wk"], prep["wv"], prep["bk"], prep["bv"], out_dtype=cdt)
    k = k.reshape(B, Nk, E)
    v = v.reshape(B, Nk, E)

    # combine_masks: bool pad_mask -> additive f32 mask broadcast over heads & queries.
    if pad_mask is not None:
        mask = jnp.where(pad_mask, _MASK_VALUE, 0.0).astype(jnp.float32).reshape(B, 1, Nk)
    else:
        mask = jnp.zeros((B, 1, Nk), jnp.float32)

    # attention + out_proj fused (one [B,Nq,E] HBM round trip saved).
    return attention_outproj(q, k, v, mask, prep["wo"], prep["bo"], heads,
                             out_dtype=out_dtype)
    # TODO(synk): dropout_p > 0 (training), attn_mask and is_causal=True paths
    #             not implemented.


# -------------------------- reference (plain JAX) --------------------------- #
def cross_attention_ref(query, kv, params, heads, pad_mask=None):
    B, Nq, E = query.shape
    _, Nk, _ = kv.shape
    D = E // heads
    q = query @ params["wq"] + params["bq"]
    kvp = kv @ params["wkv"] + params["bkv"]
    k, v = kvp[..., :E], kvp[..., E:]
    qh = q.reshape(B, Nq, heads, D).transpose(0, 2, 1, 3)
    kh = k.reshape(B, Nk, heads, D).transpose(0, 2, 1, 3)
    vh = v.reshape(B, Nk, heads, D).transpose(0, 2, 1, 3)
    s = jnp.einsum("bhqd,bhkd->bhqk", qh, kh) / math.sqrt(D)
    if pad_mask is not None:
        s = s + jnp.where(pad_mask, -jnp.inf, 0.0)[:, None, None, :]
    p = jax.nn.softmax(s, axis=-1)
    o = jnp.einsum("bhqk,bhkd->bhqd", p, vh)
    o = o.transpose(0, 2, 1, 3).reshape(B, Nq, E)
    return o @ params["wo"] + params["bo"]


# ---------------------------------- main ------------------------------------ #
if __name__ == "__main__":
    key = jax.random.PRNGKey(0)
    B, Nq, Nk, E, H = 2, 8, 8, 32, 4

    keys = jax.random.split(key, 9)
    bound = 1.0 / math.sqrt(E)
    params = {
        # weights stored input-major: y = x @ w + b  (equivalent to PyTorch W^T)
        "wq":  jax.random.uniform(keys[0], (E, E),     jnp.float32, -bound, bound),
        "bq":  jax.random.uniform(keys[1], (E,),       jnp.float32, -bound, bound),
        "wkv": jax.random.uniform(keys[2], (E, 2 * E), jnp.float32, -bound, bound),
        "bkv": jax.random.uniform(keys[3], (2 * E,),   jnp.float32, -bound, bound),
        "wo":  jax.random.uniform(keys[4], (E, E),     jnp.float32, -bound, bound),
        "bo":  jax.random.uniform(keys[5], (E,),       jnp.float32, -bound, bound),
    }

    query = jax.random.normal(keys[6], (B, Nq, E), jnp.float32)
    kv = jax.random.normal(keys[7], (B, Nk, E), jnp.float32)
    # pad_mask: True = padded key position (last 2 keys of batch 1 padded)
    pad_mask = jnp.zeros((B, Nk), bool).at[1, -2:].set(True)

    ref = cross_attention_ref(query, kv, params, H, pad_mask)

    # f32 path: exact match modulo approx reciprocal in the softmax.
    prep_f32 = prepare_params(params, H, jnp.float32)
    out = jax.block_until_ready(cross_attention(query, kv, prep_f32, H, pad_mask))
    assert out.shape == (B, Nq, E)
    assert jnp.allclose(out, ref, rtol=2e-3, atol=2e-3), "f32 mismatch vs reference"

    # bf16 MXU-operand path (f32 accumulation, f32 softmax): looser tolerance.
    prep_bf16 = prepare_params(params, H, jnp.bfloat16)
    out16 = jax.block_until_ready(cross_attention(query, kv, prep_bf16, H, pad_mask))
    assert out16.shape == (B, Nq, E)
    assert jnp.allclose(out16, ref, rtol=1e-1, atol=1e-1), "bf16 mismatch vs reference"

    print("KERNEL_OK")
</pallas_src>

<mosaic_0001>
module attributes {stable_mosaic.version = 11 : i64} {
  func.func @_linear_kernel(%arg0: i32, %arg1: i32, %arg2: i32, %arg3: memref<16x32xf32, #tpu.memory_space<vmem>>, %arg4: memref<32x32xf32, #tpu.memory_space<vmem>>, %arg5: memref<1x32xf32, #tpu.memory_space<vmem>>, %arg6: memref<16x32xf32, #tpu.memory_space<vmem>>, %arg7: memref<16x32xf32, #tpu.memory_space<vmem>>) attributes {dimension_semantics = [#tpu.dimension_semantics<parallel>, #tpu.dimension_semantics<parallel>, #tpu.dimension_semantics<arbitrary>], iteration_bounds = array<i64: 1, 1, 1>, scalar_prefetch = 0 : i64, scratch_operands = 1 : i64, tpu.core_type = #tpu.core_type<tc>, window_params = [{transform_indices = @transform_0, window_bounds = array<i64: 16, 32>}, {transform_indices = @transform_1, window_bounds = array<i64: 32, 32>}, {transform_indices = @transform_2, window_bounds = array<i64: 1, 32>}, {transform_indices = @transform_3, window_bounds = array<i64: 16, 32>}]} {
    %c0_i32 = arith.constant 0 : i32
    %0 = arith.cmpi eq, %arg2, %c0_i32 : i32
    %1 = arith.extui %0 : i1 to i32
    %c0_i32_0 = arith.constant 0 : i32
    %2 = arith.cmpi ne, %1, %c0_i32_0 : i32
    scf.if %2 {
      %cst_10 = arith.constant 0.000000e+00 : f32
      %12 = vector.broadcast %cst_10 : f32 to vector<16x32xf32>
      %c0_11 = arith.constant 0 : index
      %c0_12 = arith.constant 0 : index
      %13 = vector.load %arg7[%c0_11, %c0_12] : memref<16x32xf32, #tpu.memory_space<vmem>>, vector<16x32xf32>
      tpu.vector_store %arg7[%c0_11, %c0_12], %12 {strides = array<i32>} : memref<16x32xf32, #tpu.memory_space<vmem>>, vector<16x32xf32>,
    } else {
    }
    %c0 = arith.constant 0 : index
    %c0_1 = arith.constant 0 : index
    %3 = vector.load %arg7[%c0, %c0_1] : memref<16x32xf32, #tpu.memory_space<vmem>>, vector<16x32xf32>
    %c0_2 = arith.constant 0 : index
    %c0_3 = arith.constant 0 : index
    %4 = vector.load %arg3[%c0_2, %c0_3] : memref<16x32xf32, #tpu.memory_space<vmem>>, vector<16x32xf32>
    %c0_4 = arith.constant 0 : index
    %c0_5 = arith.constant 0 : index
    %5 = vector.load %arg4[%c0_4, %c0_5] : memref<32x32xf32, #tpu.memory_space<vmem>>, vector<32x32xf32>
    %cst = arith.constant dense<0.000000e+00> : vector<16x32xf32>
    %6 = tpu.matmul %4, %5, %cst {dimension_numbers = #tpu.dot_dimension_numbers<[1], [0], [0], [1], [0, 0, 1, 1], [], []>} : vector<16x32xf32>, vector<32x32xf32>, vector<16x32xf32> -> vector<16x32xf32>
    %7 = arith.addf %3, %6 : vector<16x32xf32>
    %c0_6 = arith.constant 0 : index
    %c0_7 = arith.constant 0 : index
    %8 = vector.load %arg7[%c0_6, %c0_7] : memref<16x32xf32, #tpu.memory_space<vmem>>, vector<16x32xf32>
    tpu.vector_store %arg7[%c0_6, %c0_7], %7 {strides = array<i32>} : memref<16x32xf32, #tpu.memory_space<vmem>>, vector<16x32xf32>,
    %c0_i32_8 = arith.constant 0 : i32
    %9 = arith.cmpi eq, %arg2, %c0_i32_8 : i32
    %10 = arith.extui %9 : i1 to i32
    %c0_i32_9 = arith.constant 0 : i32
    %11 = arith.cmpi ne, %10, %c0_i32_9 : i32
    scf.if %11 {
      %c0_10 = arith.constant 0 : index
      %c0_11 = arith.constant 0 : index
      %12 = vector.load %arg7[%c0_10, %c0_11] : memref<16x32xf32, #tpu.memory_space<vmem>>, vector<16x32xf32>
      %c0_12 = arith.constant 0 : index
      %c0_13 = arith.constant 0 : index
      %13 = vector.load %arg5[%c0_12, %c0_13] : memref<1x32xf32, #tpu.memory_space<vmem>>, vector<1x32xf32>
      %14 = vector.broadcast %13 : vector<1x32xf32> to vector<16x32xf32>
      %15 = arith.addf %12, %14 : vector<16x32xf32>
      %c0_14 = arith.constant 0 : index
      %c0_15 = arith.constant 0 : index
      %16 = vector.load %arg6[%c0_14, %c0_15] : memref<16x32xf32, #tpu.memory_space<vmem>>, vector<16x32xf32>
      tpu.vector_store %arg6[%c0_14, %c0_15], %15 {strides = array<i32>} : memref<16x32xf32, #tpu.memory_space<vmem>>, vector<16x32xf32>,
    } else {
    }
    return
  }
  func.func @transform_0(%arg0: i32, %arg1: i32, %arg2: i32) -> (i32, i32) {
    %c0_i32 = arith.constant 0 : i32
    return %arg0, %arg2 : i32, i32
  }
  func.func @transform_1(%arg0: i32, %arg1: i32, %arg2: i32) -> (i32, i32) {
    %c0_i32 = arith.constant 0 : i32
    return %arg2, %arg1 : i32, i32
  }
  func.func @transform_2(%arg0: i32, %arg1: i32, %arg2: i32) -> (i32, i32) {
    %c0_i32 = arith.constant 0 : i32
    %c0_i32_0 = arith.constant 0 : i32
    return %c0_i32, %arg1 : i32, i32
  }
  func.func @transform_3(%arg0: i32, %arg1: i32, %arg2: i32) -> (i32, i32) {
    %c0_i32 = arith.constant 0 : i32
    return %arg0, %arg1 : i32, i32
  }
}

</mosaic_0001>

<llo_original>
// kernel: tpu_custom_call.1
$region0: #{tpu_custom_call.1}
  #allocation0 [shape = 'u32[]', space=smem, size = 0x4, offset = 0x4, fixed_abs, tag = 'smem constant byte address 0x4 - core index']
  #allocation1 [shape = 'u32[144,128]{1,0:T(1,128)}', space=vmem, size = 0x12000, scoped, tag = 'internal scratch']
  #allocation2 [shape = 'f32[16,32]{1,0:T(8,128)}', space=vmem, size = 0x2000, scoped, tag = 'scratch operand']
  %s0 = inlined_call_operand.hbm [shape: f32[16,32], index: 0, kind: input, shape index: {}]
  %s1 = inlined_call_operand.hbm [shape: f32[32,32], index: 1, kind: input, shape index: {}]
  %s2 = inlined_call_operand.vmem [shape: f32[1,32], index: 2, kind: input, shape index: {}]
  %s3 = inlined_call_operand.hbm [shape: f32[16,32], index: 3, kind: output, shape index: {}]
  %s4 = sld [smem:[#allocation0]]
  $region38: #{tpu_custom_call.1} parent=0
    _
  %s6 = ssub.s32 1, %s4
  %s7 = scalar_select 0, %s6, %s4
  $region1: #{tpu_custom_call.1} parent=0
    #allocation3 [shape = 'u8[8192]{0}', space=vmem, size = 0x2000, scoped, tag = 'input window, operand 0, single buffered']
    #allocation4 [shape = 's32[1]{0}', space=sflag, size = 0x4, scoped, tag = 'scoped memory for tpu_custom_call.1']
    #allocation5 [shape = 's32[1]{0}', space=sflag, size = 0x4, scoped, tag = 'scoped memory for tpu_custom_call.1']
    #allocation6 [shape = 'u8[16384]{0}', space=vmem, size = 0x4000, scoped, tag = 'input window, operand 1, single buffered']
    #allocation7 [shape = 's32[1]{0}', space=sflag, size = 0x4, scoped, tag = 'scoped memory for tpu_custom_call.1']
    #allocation8 [shape = 'u8[8192]{0}', space=vmem, size = 0x2000, scoped, tag = 'output window, operand 0, single buffered']
    %8 = vsyncpa [#allocation4], 0
    %9 = vsyncpa [#allocation7], 0
    %10 = vsyncpa [#allocation5], 0
    // Predicated region
    $region2: #{tpu_custom_call.1} parent=1 // pred_check
      _
    $region3: #{tpu_custom_call.1} parent=1 // pred_check_branch
      %12 = sbr.rel (0) target = $region5
    $region4: #{tpu_custom_call.1} parent=1 // pred_region
      %s14 = ssub.s32 256, 256
      %15 = vsyncadd [#allocation4], %s14
      %s16 = sshll.u32 [#allocation3], 4
      %s17 = int_to_ptr.vmem [resolvable:$true] %s16
      %22 = dma.hbm_to_vmem [thread:$0]  %s0, 256, %s17, [#allocation4], 128, 128, 8
    $region5: #{tpu_custom_call.1} parent=1 // pred_fallthru
      _
    // Predicated region
    $region6: #{tpu_custom_call.1} parent=1 // pred_check
      _
    $region7: #{tpu_custom_call.1} parent=1 // pred_check_branch
      %24 = sbr.rel (0) target = $region9
    $region8: #{tpu_custom_call.1} parent=1 // pred_region
      %s26 = ssub.s32 512, 512
      %27 = vsyncadd [#allocation7], %s26
      %s28 = sshll.u32 [#allocation6], 4
      %s29 = int_to_ptr.vmem [resolvable:$true] %s28
      %34 = dma.hbm_to_vmem [thread:$0]  %s1, 512, %s29, [#allocation7], 128, 128, 8
    $region9: #{tpu_custom_call.1} parent=1 // pred_fallthru
      _
    // Predicated region
    $region10: #{tpu_custom_call.1} parent=1 // pred_check
      _
    $region11: #{tpu_custom_call.1} parent=1 // pred_check_branch
      %36 = sbr.rel (0) target = $region13
    $region12: #{tpu_custom_call.1} parent=1 // pred_region
      _
    $region13: #{tpu_custom_call.1} parent=1 // pred_fallthru
      _
    // Predicated region
    $region14: #{tpu_custom_call.1} parent=1 // pred_check
      _
    $region15: #{tpu_custom_call.1} parent=1 // pred_check_branch
      %38 = sbr.rel (0) target = $region17
    $region16: #{tpu_custom_call.1} parent=1 // pred_region
      %39 = dma.done [#allocation4], 256
    $region17: #{tpu_custom_call.1} parent=1 // pred_fallthru
      _
    // Predicated region
    $region18: #{tpu_custom_call.1} parent=1 // pred_check
      _
    $region19: #{tpu_custom_call.1} parent=1 // pred_check_branch
      %41 = sbr.rel (0) target = $region21
    $region20: #{tpu_custom_call.1} parent=1 // pred_region
      %42 = dma.done [#allocation7], 512
    $region21: #{tpu_custom_call.1} parent=1 // pred_fallthru
      _
    %p43 = scmp.eq.s32.totalorder 0, 0
    // Predicated region
    $region22: #{tpu_custom_call.1} parent=1 // pred_check
      %p44 = pneg %p43
    $region23: #{tpu_custom_call.1} parent=1 // pred_check_branch
      %46 = sbr.rel (%p44) target = $region25
    $region24: #{tpu_custom_call.1} parent=1 // pred_region
      %vm47 = vcmask 261120
      %48 = vst.msk [vmem:[#allocation2] sm:$0xff] %vm47, 0.0
      %49 = vst.msk [vmem:[#allocation2 + $0x8] sm:$0xff] %vm47, 0.0
    $region25: #{tpu_custom_call.1} parent=1 // pred_fallthru
      _
    %v50 = vld [vmem:[#allocation2] sm:$0xff]
    %v51 = vld [vmem:[#allocation2 + $0x8] sm:$0xff]
    %v52 = vld [vmem:[#allocation3] sm:$0xff]
    %v53 = vld [vmem:[#allocation3 + $0x8] sm:$0xff]
    %v54 = vld [vmem:[#allocation6] sm:$0xff]
    %v55 = vld [vmem:[#allocation6 + $0x8] sm:$0xff]
    %v56 = vld [vmem:[#allocation6 + $0x10] sm:$0xff]
    %v57 = vld [vmem:[#allocation6 + $0x18] sm:$0xff]
    %vm58 = vcmask 261120
    %v60 = vsel %vm58, %v52, 0
    %v63 = vsel %vm58, %v53, 0
    %65 = vmatprep.subr.mxu0 0.0
    %66 = vmatpush1.msra.mxu0 0.0
    %67 = vmatprep.subr.mxu0 0.0
    %68 = vmatpush1.msra.mxu0 0.0
    %69 = vmatprep.subr.mxu0 0.0
    %70 = vmatpush1.msra.mxu0 0.0
    %71 = vmatprep.subr.mxu0 0.0
    %72 = vmatpush1.msra.mxu0 0.0
    %73 = vmatprep.subr.mxu0 0.0
    %74 = vmatpush1.msra.mxu0 0.0
    %75 = vmatprep.subr.mxu0 0.0
    %76 = vmatpush1.msra.mxu0 0.0
    %77 = vmatprep.subr.mxu0 0.0
    %78 = vmatpush1.msra.mxu0 0.0
    %79 = vmatprep.subr.mxu0 0.0
    %80 = vmatpush1.msra.mxu0 0.0
    %81 = vmatprep.subr.mxu0 0.0
    %82 = vmatpush1.msra.mxu0 0.0
    %83 = vmatprep.subr.mxu0 0.0
    %84 = vmatpush1.msra.mxu0 0.0
    %85 = vmatprep.subr.mxu0 0.0
    %86 = vmatpush1.msra.mxu0 0.0
    %87 = vmatprep.subr.mxu0 0.0
    %88 = vmatpush1.msra.mxu0 0.0
    %89 = vmatprep.subr.mxu0 0.0
    %90 = vmatpush1.msra.mxu0 %v57
    %91 = vmatprep.subr.mxu0 0.0
    %92 = vmatpush1.msra.mxu0 %v56
    %93 = vmatprep.subr.mxu0 0.0
    %94 = vmatpush1.msra.mxu0 %v55
    %95 = vmatprep.subr.mxu0 0.0
    %96 = vmatpush1.msra.mxu0 %v54
    %97 = vmatprep.subr.mxu0 0.0
    %98 = vmatpush2.msra.mxu0 0.0
    %99 = vmatprep.subr.mxu0 0.0
    %100 = vmatpush2.msra.mxu0 0.0
    %101 = vmatprep.subr.mxu0 0.0
    %102 = vmatpush2.msra.mxu0 0.0
    %103 = vmatprep.subr.mxu0 0.0
    %104 = vmatpush2.msra.mxu0 0.0
    %105 = vmatprep.subr.mxu0 0.0
    %106 = vmatpush2.msra.mxu0 0.0
    %107 = vmatprep.subr.mxu0 0.0
    %108 = vmatpush2.msra.mxu0 0.0
    %109 = vmatprep.subr.mxu0 0.0
    %110 = vmatpush2.msra.mxu0 0.0
    %111 = vmatprep.subr.mxu0 0.0
    %112 = vmatpush2.msra.mxu0 0.0
    %113 = vmatprep.subr.mxu0 0.0
    %114 = vmatpush2.msra.mxu0 0.0
    %115 = vmatprep.subr.mxu0 0.0
    %116 = vmatpush2.msra.mxu0 0.0
    %117 = vmatprep.subr.mxu0 0.0
    %118 = vmatpush2.msra.mxu0 0.0
    %119 = vmatprep.subr.mxu0 0.0
    %120 = vmatpush2.msra.mxu0 0.0
    %121 = vmatprep.subr.mxu0 0.0
    %122 = vmatpush2.msra.mxu0 0.0
    %123 = vmatprep.subr.mxu0 0.0
    %124 = vmatpush2.msra.mxu0 0.0
    %125 = vmatprep.subr.mxu0 0.0
    %126 = vmatpush2.msra.mxu0 0.0
    %127 = vmatprep.subr.mxu0 0.0
    %128 = vmatpush2.msra.mxu0 0.0
    %129 = vmatprep.mubr.f32.mxu0 0.0
    %130 = vmatmul.mubr.f32.gmra.mxu0 %v60
    %v131 = vpop.f32.mrf.mxu0
    %v132 = vadd.f32 0.0, %v131
    %v133 = vpop.f32.mrf.mxu0
    %134 = vmatprep.mubr.f32.mxu0 0.0
    %135 = vmatmul.mubr.f32.gmra.mxu0 %v63
    %v136 = vpop.f32.mrf.mxu0
    %v137 = vadd.f32 0.0, %v136
    %v138 = vpop.f32.mrf.mxu0
    %139 = vdwg.mxu0
    %v140 = vadd.f32 %v50, %v132
    %v141 = vadd.f32 %v51, %v137
    %142 = vst.msk [vmem:[#allocation2] sm:$0xff] %vm58, %v140
    %143 = vst.msk [vmem:[#allocation2 + $0x8] sm:$0xff] %vm58, %v141
    // Predicated region
    $region26: #{tpu_custom_call.1} parent=1 // pred_check
      %p144 = pneg %p43
    $region27: #{tpu_custom_call.1} parent=1 // pred_check_branch
      %146 = sbr.rel (%p144) target = $region29
    $region28: #{tpu_custom_call.1} parent=1 // pred_region
      %v147 = vld [vmem:[#allocation2] sm:$0xff]
      %v148 = vld [vmem:[#allocation2 + $0x8] sm:$0xff]
      %v149 = vld [vmem:[%s2] sm:$0x1]
      %v151 = vlaneseq
      %v152 = vshrl.u32 %v151, 7
      %v153 = vsub.s32 0, %v152
      %v154 = vrot.slane %v149, %v153
      %v156 = vadd.f32 %v147, %v154
      %v157 = vadd.f32 %v148, %v154
      %158 = vst.msk [vmem:[#allocation8] sm:$0xff] %vm58, %v156
      %159 = vst.msk [vmem:[#allocation8 + $0x8] sm:$0xff] %vm58, %v157
    $region29: #{tpu_custom_call.1} parent=1 // pred_fallthru
      _
    // Predicated region
    $region30: #{tpu_custom_call.1} parent=1 // pred_check
      _
    $region31: #{tpu_custom_call.1} parent=1 // pred_check_branch
      %161 = sbr.rel (0) target = $region33
    $region32: #{tpu_custom_call.1} parent=1 // pred_region
      %s163 = ssub.s32 256, 256
      %164 = vsyncadd [#allocation5], %s163
      %s165 = sshll.u32 [#allocation8], 4
      %s166 = int_to_ptr.vmem [resolvable:$true] %s165
      %171 = dma.vmem_to_hbm [thread:$0]  %s166, 256, %s3, [#allocation5], 128, 128, 8
    $region33: #{tpu_custom_call.1} parent=1 // pred_fallthru
      _
    // Predicated region
    $region34: #{tpu_custom_call.1} parent=1 // pred_check
      _
    $region35: #{tpu_custom_call.1} parent=1 // pred_check_branch
      %173 = sbr.rel (0) target = $region37
    $region36: #{tpu_custom_call.1} parent=1 // pred_region
      %174 = dma.done [#allocation5], 256
    $region37: #{tpu_custom_call.1} parent=1 // pred_fallthru
      _
    %175 = vsyncpa [#allocation4], 1
    %176 = vsyncpa [#allocation7], 1
    %177 = vsyncpa [#allocation5], 1

</llo_original>
